<compile_context>
chip_gen: v7x
topology: tpu7x:2x2x1
jax: 0.10.0
libtpu: 0.0.40
codegen_flags: <defaults>
</compile_context>

<pallas_src>
import functools

import jax
import jax.numpy as jnp
from jax.experimental import pallas as pl
from jax.experimental.pallas import tpu as pltpu


def _mlp_kernel(*refs, num_layers: int, sigmoid_output: bool):
    """Fused MLP: (num_layers-1) x [Linear + ReLU] -> Linear [-> sigmoid].

    refs = (x_ref, w0, b0, w1, b1, ..., w_{L-1}, b_{L-1}, out_ref)
    Weights are stored transposed vs PyTorch, i.e. (in_dim, out_dim), so every
    layer is a row-major matmul y = x @ W + b on the MXU.  Biases are f32.
    """
    x_ref = refs[0]
    out_ref = refs[-1]
    wb_refs = refs[1:-1]

    h = x_ref[...]                        # native dtype -> MXU fast path
    compute_dtype = h.dtype
    for i in range(num_layers):
        w = wb_refs[2 * i][...]           # (in, out), same dtype as x
        b = wb_refs[2 * i + 1][...]       # (1, out), f32
        acc = jnp.dot(h, w, preferred_element_type=jnp.float32)
        acc = acc + b
        if i < num_layers - 1:
            # ReLU in f32, cast back to native dtype for the next MXU pass.
            h = jnp.maximum(acc, 0.0).astype(compute_dtype)
        else:
            h = acc
    if sigmoid_output:
        h = jax.nn.sigmoid(h)
    out_ref[...] = h.astype(out_ref.dtype)


def _round_up(a, m):
    return ((a + m - 1) // m) * m


def _sublane_multiple(dtype):
    bits = jnp.dtype(dtype).itemsize * 8
    return max(8, 256 // bits)            # 8 for 32-bit, 16 for 16-bit, 32 for 8-bit


def _tpu_generation_info():
    """(vmem_capacity_bytes, num_tensorcores_per_chip), with safe fallbacks."""
    vmem_cap = 64 * 1024 * 1024           # conservative default (v7x per-TC VMEM)
    num_tc = 1
    try:
        vmem_cap = int(pltpu.get_tpu_info().vmem_capacity_bytes)
    except Exception:
        pass
    try:
        kind = jax.devices()[0].device_kind.lower()
        if "v7" in kind or "7x" in kind:
            num_tc = 2
    except Exception:
        pass
    if num_tc == 1 and vmem_cap <= 96 * 1024 * 1024:
        # Small per-core VMEM (<=96 MiB) is a v7x-class signature -> 2 TCs.
        num_tc = 2
    return vmem_cap, num_tc


def mlp_forward(x, weights, biases, *, sigmoid_output=False, tm=None,
                compute_dtype=None):
    """x: (..., input_dim). weights[i]: (in_i, out_i) (already transposed),
    biases[i]: (out_i,). Returns (..., output_dim).

    tm: optional row-tile override (auto byte-targeted if None).
    compute_dtype: optional streaming/matmul dtype (e.g. jnp.bfloat16); f32
    accumulation and f32 bias/ReLU/sigmoid are kept either way."""
    num_layers = len(weights)
    orig_shape = x.shape
    in_dim = orig_shape[-1]
    out_dim = weights[-1].shape[-1]

    x2 = x.reshape(-1, in_dim)
    if compute_dtype is not None:
        x2 = x2.astype(compute_dtype)
    cdt = x2.dtype
    # Pin a single compute dtype so jnp.dot never silently promotes.
    weights = [w.astype(cdt) for w in weights]
    biases = [b.reshape(1, -1).astype(jnp.float32) for b in biases]

    n = x2.shape[0]
    itemsize = jnp.dtype(cdt).itemsize
    sublane = _sublane_multiple(cdt)
    vmem_cap, num_tc = _tpu_generation_info()

    # ---- output lane handling ----------------------------------------------
    # Exact-width (full-extent last dim) output by default: one contiguous HBM
    # DMA per tile, no write amplification, no wrapper slice.  Only pad when
    # out_dim is already wide and within ~12.5% of a multiple of 128 (unmasked
    # vst at negligible extra bytes).
    out_pad = _round_up(out_dim, 128)
    pad_cols = out_pad - out_dim
    use_pad = pad_cols > 0 and out_dim >= 128 and pad_cols * 8 <= out_dim
    out_store = out_pad if use_pad else out_dim
    if use_pad:
        weights = list(weights)
        weights[-1] = jnp.pad(weights[-1], ((0, 0), (0, pad_cols)))
        biases[-1] = jnp.pad(biases[-1], ((0, 0), (0, pad_cols)))

    # ---- row-tile selection: byte-targeted, VMEM-budgeted -------------------
    widest = max([in_dim] + [w.shape[1] for w in weights])

    def vmem_estimate(t):
        est = 2 * t * in_dim * itemsize                    # double-buffered x tiles
        est += 2 * t * out_store * itemsize                # double-buffered out tiles
        est += 2 * sum(w.size * w.dtype.itemsize for w in weights)
        est += 2 * sum(b.size * b.dtype.itemsize for b in biases)
        est += 2 * t * widest * 4                          # f32 intermediates
        return est

    vmem_budget = int(0.6 * vmem_cap)                      # ~76 MiB v5e/v6e, ~38 MiB v7x

    if tm is None:
        # Target >= ~4 MiB of streamed (x-in + out-out) bytes per grid step; on
        # v7x the faster HBM makes the fixed per-step cost relatively larger,
        # so aim bigger.
        target_bytes = 8 * 1024 * 1024 if num_tc >= 2 else 4 * 1024 * 1024
        bytes_per_row = max(1, (in_dim + out_store) * itemsize)
        tm_req = (target_bytes // bytes_per_row) // sublane * sublane
        tm_req = int(min(max(tm_req, sublane), 32768))
    else:
        tm_req = max(sublane, (int(tm) // sublane) * sublane)
    while vmem_estimate(tm_req) > vmem_budget and tm_req > sublane:
        tm_req = max(sublane, tm_req // 2)

    if n <= tm_req:
        if num_tc >= 2 and n >= 512 and n >= 2 * sublane:
            # v7x megacore: give both TensorCores a block to work on.
            tm_eff = _round_up(pl.cdiv(n, 2), sublane)
        else:
            tm_eff = n                                     # single full-extent block
    else:
        tm_eff = tm_req
    grid_m = pl.cdiv(n, tm_eff)
    if num_tc >= 2 and grid_m > 1 and grid_m % 2 == 1:
        # Balance the two TensorCores: prefer an even number of grid steps.
        tm_try = _round_up(pl.cdiv(n, grid_m + 1), sublane)
        if tm_try >= sublane:
            tm_eff = tm_try
            grid_m = pl.cdiv(n, tm_eff)

    est = vmem_estimate(tm_eff)
    vmem_limit = None
    if est > 8 * 1024 * 1024:                              # v5e default scoped VMEM is 16 MiB
        vmem_limit = int(min(max(2 * est, 32 * 1024 * 1024), int(0.75 * vmem_cap)))

    kernel = functools.partial(
        _mlp_kernel, num_layers=num_layers, sigmoid_output=sigmoid_output
    )

    in_specs = [pl.BlockSpec((tm_eff, in_dim), lambda i: (i, 0))]
    operands = [x2]
    for w, b in zip(weights, biases):
        in_specs.append(pl.BlockSpec(w.shape, lambda i: (0, 0)))   # VMEM-resident
        in_specs.append(pl.BlockSpec(b.shape, lambda i: (0, 0)))
        operands.append(w)
        operands.append(b)

    out = pl.pallas_call(
        kernel,
        out_shape=jax.ShapeDtypeStruct((n, out_store), x.dtype),
        grid_spec=pltpu.PrefetchScalarGridSpec(
            num_scalar_prefetch=0,
            grid=(grid_m,),
            in_specs=in_specs,
            out_specs=pl.BlockSpec((tm_eff, out_store), lambda i: (i, 0)),
        ),
        compiler_params=pltpu.CompilerParams(
            dimension_semantics=("parallel",),
            vmem_limit_bytes=vmem_limit,
        ),
    )(*operands)

    if use_pad:
        out = out[:, :out_dim]
    return out.reshape(*orig_shape[:-1], out_dim)


def init_mlp_params(key, input_dim, hidden_dim, output_dim, num_layers,
                    dtype=jnp.float32):
    """Deterministic synthetic init matching nn.Linear shapes.
    PyTorch stores W as (out, in); we return W already transposed to (in, out)."""
    h = [hidden_dim] * (num_layers - 1)
    dims_in = [input_dim] + h
    dims_out = h + [output_dim]
    weights, biases = [], []
    for n_in, n_out in zip(dims_in, dims_out):
        key, kw, kb = jax.random.split(key, 3)
        bound = 1.0 / (n_in ** 0.5)
        w = jax.random.uniform(kw, (n_out, n_in), dtype, -bound, bound)
        b = jax.random.uniform(kb, (n_out,), dtype, -bound, bound)
        weights.append(w.T)          # store as (in, out) for the kernel
        biases.append(b)
    return weights, biases


def mlp_reference(x, weights, biases, sigmoid_output=False):
    h = x
    for i, (w, b) in enumerate(zip(weights, biases)):
        h = h @ w + b
        if i < len(weights) - 1:
            h = jnp.maximum(h, 0.0)
    if sigmoid_output:
        h = jax.nn.sigmoid(h)
    return h


if __name__ == "__main__":
    # Small shapes consistent with the module: tokens of dim input_dim -> output_dim.
    batch, seq = 2, 8
    input_dim, hidden_dim, output_dim, num_layers = 32, 64, 16, 3
    sigmoid_output = True

    key = jax.random.PRNGKey(0)
    kx, kp = jax.random.split(key)
    x = jax.random.normal(kx, (batch, seq, input_dim), jnp.float32)
    weights, biases = init_mlp_params(
        kp, input_dim, hidden_dim, output_dim, num_layers
    )

    out = mlp_forward(x, weights, biases, sigmoid_output=sigmoid_output)
    out = jax.block_until_ready(out)

    ref = mlp_reference(x, weights, biases, sigmoid_output=sigmoid_output)
    assert out.shape == (batch, seq, output_dim), out.shape
    assert jnp.allclose(out, ref, atol=1e-5, rtol=1e-5), "mismatch vs reference"

    print("KERNEL_OK")
</pallas_src>

<mosaic_0001>
module attributes {stable_mosaic.version = 11 : i64} {
  func.func @_mlp_kernel(%arg0: i32, %arg1: memref<16x32xf32, #tpu.memory_space<vmem>>, %arg2: memref<32x64xf32, #tpu.memory_space<vmem>>, %arg3: memref<1x64xf32, #tpu.memory_space<vmem>>, %arg4: memref<64x64xf32, #tpu.memory_space<vmem>>, %arg5: memref<1x64xf32, #tpu.memory_space<vmem>>, %arg6: memref<64x16xf32, #tpu.memory_space<vmem>>, %arg7: memref<1x16xf32, #tpu.memory_space<vmem>>, %arg8: memref<16x16xf32, #tpu.memory_space<vmem>>) attributes {dimension_semantics = [#tpu.dimension_semantics<parallel>], iteration_bounds = array<i64: 1>, scalar_prefetch = 0 : i64, scratch_operands = 0 : i64, tpu.core_type = #tpu.core_type<tc>, window_params = [{transform_indices = @transform_0, window_bounds = array<i64: 16, 32>}, {pipeline_mode = #tpu.pipeline_mode<synchronous>, transform_indices = @transform_1, window_bounds = array<i64: 32, 64>}, {pipeline_mode = #tpu.pipeline_mode<synchronous>, transform_indices = @transform_2, window_bounds = array<i64: 1, 64>}, {pipeline_mode = #tpu.pipeline_mode<synchronous>, transform_indices = @transform_3, window_bounds = array<i64: 64, 64>}, {pipeline_mode = #tpu.pipeline_mode<synchronous>, transform_indices = @transform_4, window_bounds = array<i64: 1, 64>}, {pipeline_mode = #tpu.pipeline_mode<synchronous>, transform_indices = @transform_5, window_bounds = array<i64: 64, 16>}, {pipeline_mode = #tpu.pipeline_mode<synchronous>, transform_indices = @transform_6, window_bounds = array<i64: 1, 16>}, {transform_indices = @transform_7, window_bounds = array<i64: 16, 16>}]} {
    %c0 = arith.constant 0 : index
    %c0_0 = arith.constant 0 : index
    %0 = vector.load %arg1[%c0, %c0_0] : memref<16x32xf32, #tpu.memory_space<vmem>>, vector<16x32xf32>
    %c0_1 = arith.constant 0 : index
    %c0_2 = arith.constant 0 : index
    %1 = vector.load %arg2[%c0_1, %c0_2] : memref<32x64xf32, #tpu.memory_space<vmem>>, vector<32x64xf32>
    %c0_3 = arith.constant 0 : index
    %c0_4 = arith.constant 0 : index
    %2 = vector.load %arg3[%c0_3, %c0_4] : memref<1x64xf32, #tpu.memory_space<vmem>>, vector<1x64xf32>
    %cst = arith.constant dense<0.000000e+00> : vector<16x64xf32>
    %3 = tpu.matmul %0, %1, %cst {dimension_numbers = #tpu.dot_dimension_numbers<[1], [0], [0], [1], [0, 0, 1, 1], [], []>} : vector<16x32xf32>, vector<32x64xf32>, vector<16x64xf32> -> vector<16x64xf32>
    %4 = vector.broadcast %2 : vector<1x64xf32> to vector<16x64xf32>
    %5 = arith.addf %3, %4 : vector<16x64xf32>
    %cst_5 = arith.constant 0.000000e+00 : f32
    %6 = vector.broadcast %cst_5 : f32 to vector<16x64xf32>
    %7 = arith.maximumf %5, %6 : vector<16x64xf32>
    %c0_6 = arith.constant 0 : index
    %c0_7 = arith.constant 0 : index
    %8 = vector.load %arg4[%c0_6, %c0_7] : memref<64x64xf32, #tpu.memory_space<vmem>>, vector<64x64xf32>
    %c0_8 = arith.constant 0 : index
    %c0_9 = arith.constant 0 : index
    %9 = vector.load %arg5[%c0_8, %c0_9] : memref<1x64xf32, #tpu.memory_space<vmem>>, vector<1x64xf32>
    %cst_10 = arith.constant dense<0.000000e+00> : vector<16x64xf32>
    %10 = tpu.matmul %7, %8, %cst_10 {dimension_numbers = #tpu.dot_dimension_numbers<[1], [0], [0], [1], [0, 0, 1, 1], [], []>} : vector<16x64xf32>, vector<64x64xf32>, vector<16x64xf32> -> vector<16x64xf32>
    %11 = vector.broadcast %9 : vector<1x64xf32> to vector<16x64xf32>
    %12 = arith.addf %10, %11 : vector<16x64xf32>
    %cst_11 = arith.constant 0.000000e+00 : f32
    %13 = vector.broadcast %cst_11 : f32 to vector<16x64xf32>
    %14 = arith.maximumf %12, %13 : vector<16x64xf32>
    %c0_12 = arith.constant 0 : index
    %c0_13 = arith.constant 0 : index
    %15 = vector.load %arg6[%c0_12, %c0_13] : memref<64x16xf32, #tpu.memory_space<vmem>>, vector<64x16xf32>
    %c0_14 = arith.constant 0 : index
    %c0_15 = arith.constant 0 : index
    %16 = vector.load %arg7[%c0_14, %c0_15] : memref<1x16xf32, #tpu.memory_space<vmem>>, vector<1x16xf32>
    %cst_16 = arith.constant dense<0.000000e+00> : vector<16x16xf32>
    %17 = tpu.matmul %14, %15, %cst_16 {dimension_numbers = #tpu.dot_dimension_numbers<[1], [0], [0], [1], [0, 0, 1, 1], [], []>} : vector<16x64xf32>, vector<64x16xf32>, vector<16x16xf32> -> vector<16x16xf32>
    %18 = vector.broadcast %16 : vector<1x16xf32> to vector<16x16xf32>
    %19 = arith.addf %17, %18 : vector<16x16xf32>
    %20 = arith.negf %19 : vector<16x16xf32>
    %21 = math.exp %20 : vector<16x16xf32>
    %cst_17 = arith.constant 1.000000e+00 : f32
    %22 = vector.broadcast %cst_17 : f32 to vector<16x16xf32>
    %23 = arith.addf %22, %21 : vector<16x16xf32>
    %24 = arith.divf %22, %23 : vector<16x16xf32>
    %c0_18 = arith.constant 0 : index
    %c0_19 = arith.constant 0 : index
    %25 = vector.load %arg8[%c0_18, %c0_19] : memref<16x16xf32, #tpu.memory_space<vmem>>, vector<16x16xf32>
    tpu.vector_store %arg8[%c0_18, %c0_19], %24 {strides = array<i32>} : memref<16x16xf32, #tpu.memory_space<vmem>>, vector<16x16xf32>,
    return
  }
  func.func @transform_0(%arg0: i32) -> (i32, i32) {
    %c0_i32 = arith.constant 0 : i32
    %c0_i32_0 = arith.constant 0 : i32
    return %arg0, %c0_i32 : i32, i32
  }
  func.func @transform_1(%arg0: i32) -> (i32, i32) {
    %c0_i32 = arith.constant 0 : i32
    %c0_i32_0 = arith.constant 0 : i32
    %c0_i32_1 = arith.constant 0 : i32
    return %c0_i32, %c0_i32_0 : i32, i32
  }
  func.func @transform_2(%arg0: i32) -> (i32, i32) {
    %c0_i32 = arith.constant 0 : i32
    %c0_i32_0 = arith.constant 0 : i32
    %c0_i32_1 = arith.constant 0 : i32
    return %c0_i32, %c0_i32_0 : i32, i32
  }
  func.func @transform_3(%arg0: i32) -> (i32, i32) {
    %c0_i32 = arith.constant 0 : i32
    %c0_i32_0 = arith.constant 0 : i32
    %c0_i32_1 = arith.constant 0 : i32
    return %c0_i32, %c0_i32_0 : i32, i32
  }
  func.func @transform_4(%arg0: i32) -> (i32, i32) {
    %c0_i32 = arith.constant 0 : i32
    %c0_i32_0 = arith.constant 0 : i32
    %c0_i32_1 = arith.constant 0 : i32
    return %c0_i32, %c0_i32_0 : i32, i32
  }
  func.func @transform_5(%arg0: i32) -> (i32, i32) {
    %c0_i32 = arith.constant 0 : i32
    %c0_i32_0 = arith.constant 0 : i32
    %c0_i32_1 = arith.constant 0 : i32
    return %c0_i32, %c0_i32_0 : i32, i32
  }
  func.func @transform_6(%arg0: i32) -> (i32, i32) {
    %c0_i32 = arith.constant 0 : i32
    %c0_i32_0 = arith.constant 0 : i32
    %c0_i32_1 = arith.constant 0 : i32
    return %c0_i32, %c0_i32_0 : i32, i32
  }
  func.func @transform_7(%arg0: i32) -> (i32, i32) {
    %c0_i32 = arith.constant 0 : i32
    %c0_i32_0 = arith.constant 0 : i32
    return %arg0, %c0_i32 : i32, i32
  }
}

</mosaic_0001>

<llo_original>
// kernel: tpu_custom_call.1
$region0: #{tpu_custom_call.1}
  #allocation0 [shape = 'u32[]', space=smem, size = 0x4, offset = 0x4, fixed_abs, tag = 'smem constant byte address 0x4 - core index']
  #allocation1 [shape = 'u32[144,128]{1,0:T(1,128)}', space=vmem, size = 0x12000, scoped, tag = 'internal scratch']
  %s0 = inlined_call_operand.vmem [shape: f32[16,32], index: 0, kind: input, shape index: {}]
  %s1 = inlined_call_operand.hbm [shape: f32[32,64], index: 1, kind: input, shape index: {}]
  %s2 = inlined_call_operand.vmem [shape: f32[1,64], index: 2, kind: input, shape index: {}]
  %s3 = inlined_call_operand.vmem [shape: f32[64,64], index: 3, kind: input, shape index: {}]
  %s4 = inlined_call_operand.vmem [shape: f32[1,64], index: 4, kind: input, shape index: {}]
  %s5 = inlined_call_operand.vmem [shape: f32[64,16], index: 5, kind: input, shape index: {}]
  %s6 = inlined_call_operand.vmem [shape: f32[1,16], index: 6, kind: input, shape index: {}]
  %s7 = inlined_call_operand.hbm [shape: f32[16,16], index: 7, kind: output, shape index: {}]
  %s8 = sld [smem:[#allocation0]]
  $region42: #{tpu_custom_call.1} parent=0
    _
  %s10 = ssub.s32 1, %s8
  %s11 = scalar_select 0, %s10, %s8
  $region1: #{tpu_custom_call.1} parent=0
    #allocation2 [shape = 'u8[16384]{0}', space=vmem, size = 0x4000, scoped, tag = 'input window, operand 1, single buffered']
    #allocation3 [shape = 's32[1]{0}', space=sflag, size = 0x4, scoped, tag = 'scoped memory for tpu_custom_call.1']
    #allocation4 [shape = 's32[1]{0}', space=sflag, size = 0x4, scoped, tag = 'scoped memory for tpu_custom_call.1']
    #allocation5 [shape = 'u8[8192]{0}', space=vmem, size = 0x2000, scoped, tag = 'output window, operand 0, single buffered']
    %12 = vsyncpa [#allocation3], 0
    %13 = vsyncpa [#allocation4], 0
    // Predicated region
    $region2: #{tpu_custom_call.1} parent=1 // pred_check
      _
    $region3: #{tpu_custom_call.1} parent=1 // pred_check_branch
      %15 = sbr.rel (0) target = $region5
    $region4: #{tpu_custom_call.1} parent=1 // pred_region
      _
    $region5: #{tpu_custom_call.1} parent=1 // pred_fallthru
      _
    // Predicated region
    $region6: #{tpu_custom_call.1} parent=1 // pred_check
      _
    $region7: #{tpu_custom_call.1} parent=1 // pred_check_branch
      %17 = sbr.rel (0) target = $region9
    $region8: #{tpu_custom_call.1} parent=1 // pred_region
      %s19 = ssub.s32 512, 512
      %20 = vsyncadd [#allocation3], %s19
      %s21 = sshll.u32 [#allocation2], 4
      %s22 = int_to_ptr.vmem [resolvable:$true] %s21
      %27 = dma.hbm_to_vmem [thread:$0]  %s1, 512, %s22, [#allocation3], 128, 128, 8
    $region9: #{tpu_custom_call.1} parent=1 // pred_fallthru
      _
    // Predicated region
    $region10: #{tpu_custom_call.1} parent=1 // pred_check
      _
    $region11: #{tpu_custom_call.1} parent=1 // pred_check_branch
      %29 = sbr.rel (0) target = $region13
    $region12: #{tpu_custom_call.1} parent=1 // pred_region
      _
    $region13: #{tpu_custom_call.1} parent=1 // pred_fallthru
      _
    // Predicated region
    $region14: #{tpu_custom_call.1} parent=1 // pred_check
      _
    $region15: #{tpu_custom_call.1} parent=1 // pred_check_branch
      %31 = sbr.rel (0) target = $region17
    $region16: #{tpu_custom_call.1} parent=1 // pred_region
      _
    $region17: #{tpu_custom_call.1} parent=1 // pred_fallthru
      _
    // Predicated region
    $region18: #{tpu_custom_call.1} parent=1 // pred_check
      _
    $region19: #{tpu_custom_call.1} parent=1 // pred_check_branch
      %33 = sbr.rel (0) target = $region21
    $region20: #{tpu_custom_call.1} parent=1 // pred_region
      _
    $region21: #{tpu_custom_call.1} parent=1 // pred_fallthru
      _
    // Predicated region
    $region22: #{tpu_custom_call.1} parent=1 // pred_check
      _
    $region23: #{tpu_custom_call.1} parent=1 // pred_check_branch
      %35 = sbr.rel (0) target = $region25
    $region24: #{tpu_custom_call.1} parent=1 // pred_region
      _
    $region25: #{tpu_custom_call.1} parent=1 // pred_fallthru
      _
    // Predicated region
    $region26: #{tpu_custom_call.1} parent=1 // pred_check
      _
    $region27: #{tpu_custom_call.1} parent=1 // pred_check_branch
      %37 = sbr.rel (0) target = $region29
    $region28: #{tpu_custom_call.1} parent=1 // pred_region
      _
    $region29: #{tpu_custom_call.1} parent=1 // pred_fallthru
      _
    // Predicated region
    $region30: #{tpu_custom_call.1} parent=1 // pred_check
      _
    $region31: #{tpu_custom_call.1} parent=1 // pred_check_branch
      %39 = sbr.rel (0) target = $region33
    $region32: #{tpu_custom_call.1} parent=1 // pred_region
      %40 = dma.done [#allocation3], 512
    $region33: #{tpu_custom_call.1} parent=1 // pred_fallthru
      _
    %v41 = vld [vmem:[%s0] sm:$0xff]
    %v42 = vld [vmem:[%s0 + $0x8] sm:$0xff]
    %v43 = vld [vmem:[#allocation2] sm:$0xff]
    %v44 = vld [vmem:[#allocation2 + $0x8] sm:$0xff]
    %v45 = vld [vmem:[#allocation2 + $0x10] sm:$0xff]
    %v46 = vld [vmem:[#allocation2 + $0x18] sm:$0xff]
    %v47 = vld [vmem:[%s2] sm:$0x1]
    %v49 = vlaneseq
    %v50 = vshrl.u32 %v49, 7
    %v51 = vsub.s32 0, %v50
    %v52 = vrot.slane %v47, %v51
    %vm54 = vcmask 261120
    %v56 = vsel %vm54, %v41, 0
    %v59 = vsel %vm54, %v42, 0
    %61 = vmatprep.subr.mxu0 0.0
    %62 = vmatpush1.msra.mxu0 %v43
    %63 = vmatprep.subr.mxu0 0.0
    %64 = vmatpush1.msra.mxu0 %v44
    %65 = vmatprep.subr.mxu0 0.0
    %66 = vmatpush1.msra.mxu0 %v45
    %67 = vmatprep.subr.mxu0 0.0
    %68 = vmatpush1.msra.mxu0 %v46
    %69 = vmatprep.subr.mxu0 0.0
    %70 = vmatpush1.msra.mxu0 0.0
    %71 = vmatprep.subr.mxu0 0.0
    %72 = vmatpush1.msra.mxu0 0.0
    %73 = vmatprep.subr.mxu0 0.0
    %74 = vmatpush1.msra.mxu0 0.0
    %75 = vmatprep.subr.mxu0 0.0
    %76 = vmatpush1.msra.mxu0 0.0
    %77 = vmatprep.subr.mxu0 0.0
    %78 = vmatpush1.msra.mxu0 0.0
    %79 = vmatprep.subr.mxu0 0.0
    %80 = vmatpush1.msra.mxu0 0.0
    %81 = vmatprep.subr.mxu0 0.0
    %82 = vmatpush1.msra.mxu0 0.0
    %83 = vmatprep.subr.mxu0 0.0
    %84 = vmatpush1.msra.mxu0 0.0
    %85 = vmatprep.subr.mxu0 0.0
    %86 = vmatpush1.msra.mxu0 0.0
    %87 = vmatprep.subr.mxu0 0.0
    %88 = vmatpush1.msra.mxu0 0.0
    %89 = vmatprep.subr.mxu0 0.0
    %90 = vmatpush1.msra.mxu0 0.0
    %91 = vmatprep.subr.mxu0 0.0
    %92 = vmatpush1.msra.mxu0 0.0
    %93 = vmatprep.subr.mxu0 0.0
    %94 = vmatpush1.msra.mxu0 0.0
    %95 = vmatprep.subr.mxu0 0.0
    %96 = vmatpush1.msra.mxu0 0.0
    %97 = vmatprep.subr.mxu0 0.0
    %98 = vmatpush1.msra.mxu0 0.0
    %99 = vmatprep.subr.mxu0 0.0
    %100 = vmatpush1.msra.mxu0 0.0
    %101 = vmatprep.subr.mxu0 0.0
    %102 = vmatpush1.msra.mxu0 0.0
    %103 = vmatprep.subr.mxu0 0.0
    %104 = vmatpush1.msra.mxu0 0.0
    %105 = vmatprep.subr.mxu0 0.0
    %106 = vmatpush1.msra.mxu0 0.0
    %107 = vmatprep.subr.mxu0 0.0
    %108 = vmatpush1.msra.mxu0 0.0
    %109 = vmatprep.subr.mxu0 0.0
    %110 = vmatpush1.msra.mxu0 0.0
    %111 = vmatprep.subr.mxu0 0.0
    %112 = vmatpush1.msra.mxu0 0.0
    %113 = vmatprep.subr.mxu0 0.0
    %114 = vmatpush1.msra.mxu0 0.0
    %115 = vmatprep.subr.mxu0 0.0
    %116 = vmatpush1.msra.mxu0 0.0
    %117 = vmatprep.subr.mxu0 0.0
    %118 = vmatpush1.msra.mxu0 0.0
    %119 = vmatprep.subr.mxu0 0.0
    %120 = vmatpush1.msra.mxu0 0.0
    %121 = vmatprep.subr.mxu0 0.0
    %122 = vmatpush1.msra.mxu0 0.0
    %123 = vmatprep.subr.mxu0 0.0
    %124 = vmatpush1.msra.mxu0 0.0
    %125 = vmatprep.mubr.f32.mxu0 0.0
    %126 = vmatmul.mubr.f32.gmra.mrb[0].mxu0 %v56
    %v127 = vpop.f32.mrb[0].mxu0
    %v128 = vadd.f32 %v52, %v127
    %v129 = vpop.f32.mrb[0].mxu0
    %130 = vmatprep.mubr.f32.mxu0 0.0
    %131 = vmatmul.mubr.f32.gmra.mrb[0].mxu0 %v59
    %v132 = vpop.f32.mrb[0].mxu0
    %v133 = vadd.f32 %v52, %v132
    %v134 = vpop.f32.mrb[0].mxu0
    %135 = vdwg.mxu0
    %v136 = vmax.f32 %v128, 0.0
    %v137 = vmax.f32 %v133, 0.0
    %v138 = vld [vmem:[%s3] sm:$0xff]
    %v139 = vld [vmem:[%s3 + $0x8] sm:$0xff]
    %v140 = vld [vmem:[%s3 + $0x10] sm:$0xff]
    %v141 = vld [vmem:[%s3 + $0x18] sm:$0xff]
    %v142 = vld [vmem:[%s3 + $0x20] sm:$0xff]
    %v143 = vld [vmem:[%s3 + $0x28] sm:$0xff]
    %v144 = vld [vmem:[%s3 + $0x30] sm:$0xff]
    %v145 = vld [vmem:[%s3 + $0x38] sm:$0xff]
    %v146 = vld [vmem:[%s4] sm:$0x1]
    %v148 = vlaneseq
    %v149 = vshrl.u32 %v148, 7
    %v150 = vsub.s32 0, %v149
    %v151 = vrot.slane %v146, %v150
    %vm153 = vcmask 523264
    %v155 = vsel %vm153, %v136, 0
    %v158 = vsel %vm153, %v137, 0
    %160 = vmatprep.subr.mxu0 0.0
    %161 = vmatpush1.msra.mxu0 %v138
    %162 = vmatprep.subr.mxu0 0.0
    %163 = vmatpush1.msra.mxu0 %v139
    %164 = vmatprep.subr.mxu0 0.0
    %165 = vmatpush1.msra.mxu0 %v140
    %166 = vmatprep.subr.mxu0 0.0
    %167 = vmatpush1.msra.mxu0 %v141
    %168 = vmatprep.subr.mxu0 0.0
    %169 = vmatpush1.msra.mxu0 %v142
    %170 = vmatprep.subr.mxu0 0.0
    %171 = vmatpush1.msra.mxu0 %v143
    %172 = vmatprep.subr.mxu0 0.0
    %173 = vmatpush1.msra.mxu0 %v144
    %174 = vmatprep.subr.mxu0 0.0
    %175 = vmatpush1.msra.mxu0 %v145
    %176 = vmatprep.subr.mxu0 0.0
    %177 = vmatpush1.msra.mxu0 0.0
    %178 = vmatprep.subr.mxu0 0.0
    %179 = vmatpush1.msra.mxu0 0.0
    %180 = vmatprep.subr.mxu0 0.0
    %181 = vmatpush1.msra.mxu0 0.0
    %182 = vmatprep.subr.mxu0 0.0
    %183 = vmatpush1.msra.mxu0 0.0
    %184 = vmatprep.subr.mxu0 0.0
    %185 = vmatpush1.msra.mxu0 0.0
    %186 = vmatprep.subr.mxu0 0.0
    %187 = vmatpush1.msra.mxu0 0.0
    %188 = vmatprep.subr.mxu0 0.0
    %189 = vmatpush1.msra.mxu0 0.0
    %190 = vmatprep.subr.mxu0 0.0
    %191 = vmatpush1.msra.mxu0 0.0
    %192 = vmatprep.subr.mxu0 0.0
    %193 = vmatpush1.msra.mxu0 0.0
    %194 = vmatprep.subr.mxu0 0.0
    %195 = vmatpush1.msra.mxu0 0.0
    %196 = vmatprep.subr.mxu0 0.0
    %197 = vmatpush1.msra.mxu0 0.0
    %198 = vmatprep.subr.mxu0 0.0
    %199 = vmatpush1.msra.mxu0 0.0
    %200 = vmatprep.subr.mxu0 0.0
    %201 = vmatpush1.msra.mxu0 0.0
    %202 = vmatprep.subr.mxu0 0.0
    %203 = vmatpush1.msra.mxu0 0.0
    %204 = vmatprep.subr.mxu0 0.0
    %205 = vmatpush1.msra.mxu0 0.0
    %206 = vmatprep.subr.mxu0 0.0
    %207 = vmatpush1.msra.mxu0 0.0
    %208 = vmatprep.subr.mxu0 0.0
    %209 = vmatpush1.msra.mxu0 0.0
    %210 = vmatprep.subr.mxu0 0.0
    %211 = vmatpush1.msra.mxu0 0.0
    %212 = vmatprep.subr.mxu0 0.0
    %213 = vmatpush1.msra.mxu0 0.0
    %214 = vmatprep.subr.mxu0 0.0
    %215 = vmatpush1.msra.mxu0 0.0
    %216 = vmatprep.subr.mxu0 0.0
    %217 = vmatpush1.msra.mxu0 0.0
    %218 = vmatprep.subr.mxu0 0.0
    %219 = vmatpush1.msra.mxu0 0.0
    %220 = vmatprep.subr.mxu0 0.0
    %221 = vmatpush1.msra.mxu0 0.0
    %222 = vmatprep.subr.mxu0 0.0
    %223 = vmatpush1.msra.mxu0 0.0
    %224 = vmatprep.mubr.f32.mxu0 0.0
    %225 = vmatmul.mubr.f32.gmra.mrb[0].mxu0 %v155
    %v226 = vpop.f32.mrb[0].mxu0
    %v227 = vadd.f32 %v151, %v226
    %v228 = vpop.f32.mrb[0].mxu0
    %229 = vmatprep.mubr.f32.mxu0 0.0
    %230 = vmatmul.mubr.f32.gmra.mrb[0].mxu0 %v158
    %v231 = vpop.f32.mrb[0].mxu0
    %v232 = vadd.f32 %v151, %v231
    %v233 = vpop.f32.mrb[0].mxu0
    %234 = vdwg.mxu0
    %v235 = vmax.f32 %v227, 0.0
    %v236 = vmax.f32 %v232, 0.0
    %v237 = vld [vmem:[%s5] sm:$0xff]
    %v238 = vld [vmem:[%s5 + $0x8] sm:$0xff]
    %v239 = vld [vmem:[%s5 + $0x10] sm:$0xff]
    %v240 = vld [vmem:[%s5 + $0x18] sm:$0xff]
    %v241 = vld [vmem:[%s5 + $0x20] sm:$0xff]
    %v242 = vld [vmem:[%s5 + $0x28] sm:$0xff]
    %v243 = vld [vmem:[%s5 + $0x30] sm:$0xff]
    %v244 = vld [vmem:[%s5 + $0x38] sm:$0xff]
    %v245 = vld [vmem:[%s6] sm:$0x1]
    %v247 = vlaneseq
    %v248 = vshrl.u32 %v247, 7
    %v249 = vsub.s32 0, %v248
    %v250 = vrot.slane %v245, %v249
    %v253 = vsel %vm153, %v235, 0
    %v256 = vsel %vm153, %v236, 0
    %258 = vmatprep.subr.mxu0 0.0
    %259 = vmatpush1.msra.mxu0 %v237
    %260 = vmatprep.subr.mxu0 0.0
    %261 = vmatpush1.msra.mxu0 %v238
    %262 = vmatprep.subr.mxu0 0.0
    %263 = vmatpush1.msra.mxu0 %v239
    %264 = vmatprep.subr.mxu0 0.0
    %265 = vmatpush1.msra.mxu0 %v240
    %266 = vmatprep.subr.mxu0 0.0
    %267 = vmatpush1.msra.mxu0 %v241
    %268 = vmatprep.subr.mxu0 0.0
    %269 = vmatpush1.msra.mxu0 %v242
    %270 = vmatprep.subr.mxu0 0.0
    %271 = vmatpush1.msra.mxu0 %v243
    %272 = vmatprep.subr.mxu0 0.0
    %273 = vmatpush1.msra.mxu0 %v244
    %274 = vmatprep.subr.mxu0 0.0
    %275 = vmatpush1.msra.mxu0 0.0
    %276 = vmatprep.subr.mxu0 0.0
    %277 = vmatpush1.msra.mxu0 0.0
    %278 = vmatprep.subr.mxu0 0.0
    %279 = vmatpush1.msra.mxu0 0.0
    %280 = vmatprep.subr.mxu0 0.0
    %281 = vmatpush1.msra.mxu0 0.0
    %282 = vmatprep.subr.mxu0 0.0
    %283 = vmatpush1.msra.mxu0 0.0
    %284 = vmatprep.subr.mxu0 0.0
    %285 = vmatpush1.msra.mxu0 0.0
    %286 = vmatprep.subr.mxu0 0.0
    %287 = vmatpush1.msra.mxu0 0.0
    %288 = vmatprep.subr.mxu0 0.0
    %289 = vmatpush1.msra.mxu0 0.0
    %290 = vmatprep.subr.mxu0 0.0
    %291 = vmatpush1.msra.mxu0 0.0
    %292 = vmatprep.subr.mxu0 0.0
    %293 = vmatpush1.msra.mxu0 0.0
    %294 = vmatprep.subr.mxu0 0.0
    %295 = vmatpush1.msra.mxu0 0.0
    %296 = vmatprep.subr.mxu0 0.0
    %297 = vmatpush1.msra.mxu0 0.0
    %298 = vmatprep.subr.mxu0 0.0
    %299 = vmatpush1.msra.mxu0 0.0
    %300 = vmatprep.subr.mxu0 0.0
    %301 = vmatpush1.msra.mxu0 0.0
    %302 = vmatprep.subr.mxu0 0.0
    %303 = vmatpush1.msra.mxu0 0.0
    %304 = vmatprep.subr.mxu0 0.0
    %305 = vmatpush1.msra.mxu0 0.0
    %306 = vmatprep.subr.mxu0 0.0
    %307 = vmatpush1.msra.mxu0 0.0
    %308 = vmatprep.subr.mxu0 0.0
    %309 = vmatpush1.msra.mxu0 0.0
    %310 = vmatprep.subr.mxu0 0.0
    %311 = vmatpush1.msra.mxu0 0.0
    %312 = vmatprep.subr.mxu0 0.0
    %313 = vmatpush1.msra.mxu0 0.0
    %314 = vmatprep.subr.mxu0 0.0
    %315 = vmatpush1.msra.mxu0 0.0
    %316 = vmatprep.subr.mxu0 0.0
    %317 = vmatpush1.msra.mxu0 0.0
    %318 = vmatprep.subr.mxu0 0.0
    %319 = vmatpush1.msra.mxu0 0.0
    %320 = vmatprep.subr.mxu0 0.0
    %321 = vmatpush1.msra.mxu0 0.0
    %322 = vmatprep.mubr.f32.mxu0 0.0
    %323 = vmatmul.mubr.f32.gmra.mrb[0].mxu0 %v253
    %v324 = vpop.f32.mrb[0].mxu0
    %v325 = vadd.f32 %v250, %v324
    %v326 = vpop.f32.mrb[0].mxu0
    %327 = vmatprep.mubr.f32.mxu0 0.0
    %328 = vmatmul.mubr.f32.gmra.mrb[0].mxu0 %v256
    %v329 = vpop.f32.mrb[0].mxu0
    %v330 = vadd.f32 %v250, %v329
    %v331 = vpop.f32.mrb[0].mxu0
    %332 = vdwg.mxu0
    %v333 = vxor.u32 %v325, 2147483648
    %v334 = vxor.u32 %v330, 2147483648
    %v335 = vmul.f32 %v333, 1.442695
    %v336 = vpow.pop %v335
    %v337 = vmul.f32 %v334, 1.442695
    %v338 = vpow.pop %v337
    %v339 = vadd.f32 %v336, 1.0
    %v340 = vadd.f32 %v338, 1.0
    %v341 = vrcp.pop %v339
    %v342 = vmul.f32 1.0, %v341
    %v343 = vrcp.pop %v340
    %v344 = vmul.f32 1.0, %v343
    %vm345 = vcmask 130048
    %346 = vst.msk [vmem:[#allocation5] sm:$0xff] %vm345, %v342
    %347 = vst.msk [vmem:[#allocation5 + $0x8] sm:$0xff] %vm345, %v344
    // Predicated region
    $region34: #{tpu_custom_call.1} parent=1 // pred_check
      _
    $region35: #{tpu_custom_call.1} parent=1 // pred_check_branch
      %349 = sbr.rel (0) target = $region37
    $region36: #{tpu_custom_call.1} parent=1 // pred_region
      %s351 = ssub.s32 256, 256
      %352 = vsyncadd [#allocation4], %s351
      %s353 = sshll.u32 [#allocation5], 4
      %s354 = int_to_ptr.vmem [resolvable:$true] %s353
      %359 = dma.vmem_to_hbm [thread:$0]  %s354, 256, %s7, [#allocation4], 128, 128, 8
    $region37: #{tpu_custom_call.1} parent=1 // pred_fallthru
      _
    // Predicated region
    $region38: #{tpu_custom_call.1} parent=1 // pred_check
      _
    $region39: #{tpu_custom_call.1} parent=1 // pred_check_branch
      %361 = sbr.rel (0) target = $region41
    $region40: #{tpu_custom_call.1} parent=1 // pred_region
      %362 = dma.done [#allocation4], 256
    $region41: #{tpu_custom_call.1} parent=1 // pred_fallthru
      _
    %363 = vsyncpa [#allocation3], 1
    %364 = vsyncpa [#allocation4], 1

</llo_original>
